<compile_context>
chip_gen: v6e
topology: v6e:2x2x1
jax: 0.10.0
libtpu: 0.0.40
codegen_flags: <defaults>
</compile_context>

<pallas_src>
import jax
import jax.numpy as jnp
from jax.experimental import pallas as pl
from jax.experimental.pallas import tpu as pltpu

_NEG_INF = -1e30  # finite "minus infinity": avoids NaN from (-inf) - (-inf)


def _make_kernel(scale, seq_len_k, tk, kv_resident, needs_mask, compute_dtype):
    """Builds the flash-attention kernel body; all config is static."""

    def _softmax_update(s, v, m_ref, l_ref, acc_ref):
        # Online (streaming) softmax update + partial PV matmul.
        m_prev = m_ref[...]
        m_new = jnp.maximum(m_prev, jnp.max(s, axis=-1, keepdims=True))
        alpha = jnp.exp(m_prev - m_new)
        p = jnp.exp(s - m_new)
        l_ref[...] = alpha * l_ref[...] + jnp.sum(p, axis=-1, keepdims=True)
        # Dropout == identity (see module NOTE above).
        acc_ref[...] = alpha * acc_ref[...] + jnp.dot(
            p.astype(compute_dtype), v, preferred_element_type=jnp.float32)
        m_ref[...] = m_new

    def kernel(q_ref, k_ref, v_ref, o_ref, qs_ref, m_ref, l_ref, acc_ref):
        kv = pl.program_id(2)
        nkv = pl.num_programs(2)

        # ---- first KV tile for this (batch, q-tile): init state, stage Q ----
        @pl.when(kv == 0)
        def _():
            m_ref[...] = jnp.full_like(m_ref, _NEG_INF)
            l_ref[...] = jnp.zeros_like(l_ref)
            acc_ref[...] = jnp.zeros_like(acc_ref)
            q = q_ref[0]                                   # (TQ, D)
            if scale != 1.0:
                # Fold the scale into Q once per q-tile (not once per KV step).
                q = (q.astype(jnp.float32) * scale).astype(compute_dtype)
            qs_ref[...] = q

        if kv_resident:
            # K/V for the whole (padded) sequence are resident in VMEM;
            # slice out the current KV tile.
            start = pl.multiple_of(kv * tk, tk)
            k = k_ref[0, pl.ds(start, tk), :]              # (TK, D)
            v = v_ref[0, pl.ds(start, tk), :]              # (TK, D)
        else:
            k = k_ref[0]                                   # (TK, D)
            v = v_ref[0]                                   # (TK, D)

        q = qs_ref[...]                                    # (TQ, D), pre-scaled

        # Q K^T: contract last dims directly (no XLU transpose of K).
        s = jax.lax.dot_general(
            q, k,
            dimension_numbers=(((1,), (1,)), ((), ())),
            preferred_element_type=jnp.float32,
        )                                                  # (TQ, TK) f32

        if needs_mask:
            last = nkv - 1

            # Only the trailing KV tile can contain padded key columns.
            @pl.when(kv == last)
            def _():
                col = kv * tk + jax.lax.broadcasted_iota(jnp.int32, s.shape, 1)
                s_masked = jnp.where(col < seq_len_k, s, _NEG_INF)
                _softmax_update(s_masked, v, m_ref, l_ref, acc_ref)

            @pl.when(kv != last)
            def _():
                _softmax_update(s, v, m_ref, l_ref, acc_ref)
        else:
            _softmax_update(s, v, m_ref, l_ref, acc_ref)

        # ---- last KV tile: normalize + store --------------------------------
        @pl.when(kv == nkv - 1)
        def _():
            inv_l = pl.reciprocal(l_ref[...], approx=True)   # EUP slot
            o_ref[0] = (acc_ref[...] * inv_l).astype(o_ref.dtype)

    return kernel


def _round_up(x, m):
    return ((x + m - 1) // m) * m


def _pad_axis(x, target, axis):
    pad = target - x.shape[axis]
    if pad == 0:
        return x
    widths = [(0, 0)] * x.ndim
    widths[axis] = (0, pad)
    return jnp.pad(x, widths)


def sdpa_pallas(query, key, value, scale_factor, *, tq=256, tk=256,
                compute_dtype=jnp.bfloat16,
                kv_resident_budget_bytes=16 * 1024 * 1024):
    """softmax(Q K^T * scale) V, dropout treated as identity."""
    B, S, D = query.shape
    scale = float(scale_factor)
    out_dtype = query.dtype

    # Tile sizes: cap at the 16-rounded sequence length so tiny inputs are not
    # padded to a full 256-wide MXU tile.  16 covers bf16 sublane packing; any
    # single-tile axis equals the full (padded) dim and is always legal.
    tq_eff = min(tq, _round_up(S, 16))
    tk_eff = min(tk, _round_up(S, 16))
    sq = pl.cdiv(S, tq_eff) * tq_eff
    sk = pl.cdiv(S, tk_eff) * tk_eff

    # Head dim is NOT padded to 128 -- block last dim == array dim is legal and
    # avoids 4x HBM traffic for small D.
    q_p = _pad_axis(query, sq, 1).astype(compute_dtype)
    k_p = _pad_axis(key, sk, 1).astype(compute_dtype)
    v_p = _pad_axis(value, sk, 1).astype(compute_dtype)

    itemsize = jnp.dtype(compute_dtype).itemsize
    # K/V residency: whole (padded) K and V of one batch element live in VMEM
    # (x2 tensors, x2 pipeline buffers) so they are DMA'd once per batch
    # instead of once per q-tile.  Stream tiles when over budget.
    kv_resident = (2 * 2 * sk * D * itemsize) <= kv_resident_budget_bytes

    needs_mask = (sk != S)

    kernel = _make_kernel(scale, S, tk_eff, kv_resident, needs_mask,
                          compute_dtype)

    if kv_resident:
        k_spec = pl.BlockSpec((1, sk, D), lambda b, qi, ki: (b, 0, 0))
        v_spec = pl.BlockSpec((1, sk, D), lambda b, qi, ki: (b, 0, 0))
    else:
        k_spec = pl.BlockSpec((1, tk_eff, D), lambda b, qi, ki: (b, ki, 0))
        v_spec = pl.BlockSpec((1, tk_eff, D), lambda b, qi, ki: (b, ki, 0))

    out_p = pl.pallas_call(
        kernel,
        out_shape=jax.ShapeDtypeStruct((B, sq, D), out_dtype),
        grid_spec=pltpu.PrefetchScalarGridSpec(
            num_scalar_prefetch=0,
            grid=(B, sq // tq_eff, sk // tk_eff),
            in_specs=[
                pl.BlockSpec((1, tq_eff, D), lambda b, qi, ki: (b, qi, 0)),
                k_spec,
                v_spec,
            ],
            out_specs=pl.BlockSpec((1, tq_eff, D), lambda b, qi, ki: (b, qi, 0)),
            scratch_shapes=[
                pltpu.VMEM((tq_eff, D), compute_dtype),   # scaled Q (per q-tile)
                pltpu.VMEM((tq_eff, 1), jnp.float32),     # m (running max)
                pltpu.VMEM((tq_eff, 1), jnp.float32),     # l (running denom)
                pltpu.VMEM((tq_eff, D), jnp.float32),     # acc (running numerator)
            ],
        ),
        compiler_params=pltpu.CompilerParams(
            dimension_semantics=("parallel", "parallel", "arbitrary"),
            # Also lifts v5e's 16 MiB scoped default; resident-K/V budget above
            # is chosen to stay well inside this on all generations.
            vmem_limit_bytes=32 * 1024 * 1024,
        ),
    )(q_p, k_p, v_p)

    return out_p[:, :S, :]


def _reference(query, key, value, scale_factor):
    s = jnp.einsum("bqd,bkd->bqk", query, key) * scale_factor
    p = jax.nn.softmax(s, axis=-1)
    return jnp.einsum("bqk,bkd->bqd", p, value)


def _check(B, S, D, scale, key0, tol, **kwargs):
    kq, kk, kv = jax.random.split(key0, 3)
    query = jax.random.normal(kq, (B, S, D), dtype=jnp.float32)
    key = jax.random.normal(kk, (B, S, D), dtype=jnp.float32)
    value = jax.random.normal(kv, (B, S, D), dtype=jnp.float32)

    out = jax.block_until_ready(sdpa_pallas(query, key, value, scale, **kwargs))
    ref = _reference(query, key, value, scale)

    assert out.shape == (B, S, D)
    assert jnp.allclose(out, ref, atol=tol, rtol=tol), (
        f"mismatch vs reference for shape {(B, S, D)} kwargs={kwargs}")


if __name__ == "__main__":
    k0 = jax.random.PRNGKey(0)
    k1, k2, k3, k4 = jax.random.split(k0, 4)

    # Shapes from the module's example tensors: (2, 3, 4), scale_factor = 1.
    # f32 compute path for a tight check (approx reciprocal ~2^-12 rel error).
    _check(B=2, S=3, D=4, scale=1.0, key0=k1, tol=5e-3,
           compute_dtype=jnp.float32)

    # Default bf16 MXU path, single-tile with padded-column masking + residency.
    _check(B=2, S=200, D=32, scale=1.0 / (32 ** 0.5), key0=k2, tol=2.5e-2)

    # Force multiple q / kv tiles (online softmax across tiles, masked last
    # tile, unmasked full tiles) with resident K/V.
    _check(B=2, S=200, D=32, scale=1.0 / (32 ** 0.5), key0=k3, tol=2.5e-2,
           tq=64, tk=64)

    # Same, but force the streaming (non-resident) K/V path.
    _check(B=2, S=200, D=32, scale=1.0 / (32 ** 0.5), key0=k4, tol=2.5e-2,
           tq=64, tk=64, kv_resident_budget_bytes=0)

    print("KERNEL_OK")
</pallas_src>

<mosaic_0001>
module attributes {stable_mosaic.version = 11 : i64} {
  func.func @kernel(%arg0: i32, %arg1: i32, %arg2: i32, %arg3: memref<1x16x4xf32, #tpu.memory_space<vmem>>, %arg4: memref<1x16x4xf32, #tpu.memory_space<vmem>>, %arg5: memref<1x16x4xf32, #tpu.memory_space<vmem>>, %arg6: memref<1x16x4xf32, #tpu.memory_space<vmem>>, %arg7: memref<16x4xf32, #tpu.memory_space<vmem>>, %arg8: memref<16x1xf32, #tpu.memory_space<vmem>>, %arg9: memref<16x1xf32, #tpu.memory_space<vmem>>, %arg10: memref<16x4xf32, #tpu.memory_space<vmem>>) attributes {dimension_semantics = [#tpu.dimension_semantics<parallel>, #tpu.dimension_semantics<parallel>, #tpu.dimension_semantics<arbitrary>], iteration_bounds = array<i64: 2, 1, 1>, scalar_prefetch = 0 : i64, scratch_operands = 4 : i64, tpu.core_type = #tpu.core_type<tc>, window_params = [{transform_indices = @transform_0, window_bounds = array<i64: 1, 16, 4>}, {transform_indices = @transform_1, window_bounds = array<i64: 1, 16, 4>}, {transform_indices = @transform_2, window_bounds = array<i64: 1, 16, 4>}, {transform_indices = @transform_3, window_bounds = array<i64: 1, 16, 4>}]} {
    %c0_i32 = arith.constant 0 : i32
    %0 = arith.cmpi eq, %arg2, %c0_i32 : i32
    %1 = arith.extui %0 : i1 to i32
    %c0_i32_0 = arith.constant 0 : i32
    %2 = arith.cmpi ne, %1, %c0_i32_0 : i32
    scf.if %2 {
      %cst_12 = arith.constant -1.000000e+30 : f32
      %22 = vector.broadcast %cst_12 : f32 to vector<16x1xf32>
      %c0_13 = arith.constant 0 : index
      %c0_14 = arith.constant 0 : index
      %23 = vector.load %arg8[%c0_13, %c0_14] : memref<16x1xf32, #tpu.memory_space<vmem>>, vector<16x1xf32>
      tpu.vector_store %arg8[%c0_13, %c0_14], %22 {strides = array<i32>} : memref<16x1xf32, #tpu.memory_space<vmem>>, vector<16x1xf32>,
      %cst_15 = arith.constant 0.000000e+00 : f32
      %24 = vector.broadcast %cst_15 : f32 to vector<16x1xf32>
      %c0_16 = arith.constant 0 : index
      %c0_17 = arith.constant 0 : index
      %25 = vector.load %arg9[%c0_16, %c0_17] : memref<16x1xf32, #tpu.memory_space<vmem>>, vector<16x1xf32>
      tpu.vector_store %arg9[%c0_16, %c0_17], %24 {strides = array<i32>} : memref<16x1xf32, #tpu.memory_space<vmem>>, vector<16x1xf32>,
      %cst_18 = arith.constant 0.000000e+00 : f32
      %26 = vector.broadcast %cst_18 : f32 to vector<16x4xf32>
      %c0_19 = arith.constant 0 : index
      %c0_20 = arith.constant 0 : index
      %27 = vector.load %arg10[%c0_19, %c0_20] : memref<16x4xf32, #tpu.memory_space<vmem>>, vector<16x4xf32>
      tpu.vector_store %arg10[%c0_19, %c0_20], %26 {strides = array<i32>} : memref<16x4xf32, #tpu.memory_space<vmem>>, vector<16x4xf32>,
      %c0_21 = arith.constant 0 : index
      %c0_22 = arith.constant 0 : index
      %c0_23 = arith.constant 0 : index
      %28 = vector.load %arg3[%c0_21, %c0_22, %c0_23] : memref<1x16x4xf32, #tpu.memory_space<vmem>>, vector<1x16x4xf32>
      %29 = vector.shape_cast %28 : vector<1x16x4xf32> to vector<16x4xf32>
      %c0_24 = arith.constant 0 : index
      %c0_25 = arith.constant 0 : index
      %30 = vector.load %arg7[%c0_24, %c0_25] : memref<16x4xf32, #tpu.memory_space<vmem>>, vector<16x4xf32>
      tpu.vector_store %arg7[%c0_24, %c0_25], %29 {strides = array<i32>} : memref<16x4xf32, #tpu.memory_space<vmem>>, vector<16x4xf32>,
    } else {
    }
    %c16_i32 = arith.constant 16 : i32
    %3 = arith.muli %arg2, %c16_i32 : i32
    %4 = tpu.assume_multiple %3, 16 : i32
    %c0 = arith.constant 0 : index
    %5 = arith.index_cast %4 : i32 to index
    %c0_1 = arith.constant 0 : index
    %6 = vector.load %arg4[%c0, %5, %c0_1] : memref<1x16x4xf32, #tpu.memory_space<vmem>>, vector<1x16x4xf32>
    %7 = vector.shape_cast %6 : vector<1x16x4xf32> to vector<16x4xf32>
    %c0_2 = arith.constant 0 : index
    %8 = arith.index_cast %4 : i32 to index
    %c0_3 = arith.constant 0 : index
    %9 = vector.load %arg5[%c0_2, %8, %c0_3] : memref<1x16x4xf32, #tpu.memory_space<vmem>>, vector<1x16x4xf32>
    %10 = vector.shape_cast %9 : vector<1x16x4xf32> to vector<16x4xf32>
    %c0_4 = arith.constant 0 : index
    %c0_5 = arith.constant 0 : index
    %11 = vector.load %arg7[%c0_4, %c0_5] : memref<16x4xf32, #tpu.memory_space<vmem>>, vector<16x4xf32>
    %cst = arith.constant dense<0.000000e+00> : vector<16x16xf32>
    %12 = tpu.matmul %11, %7, %cst {dimension_numbers = #tpu.dot_dimension_numbers<[1], [1], [0], [0], [0, 0, 1, 0], [], []>} : vector<16x4xf32>, vector<16x4xf32>, vector<16x16xf32> -> vector<16x16xf32>
    %c0_i32_6 = arith.constant 0 : i32
    %13 = arith.cmpi eq, %arg2, %c0_i32_6 : i32
    %14 = arith.extui %13 : i1 to i32
    %c0_i32_7 = arith.constant 0 : i32
    %15 = arith.cmpi ne, %14, %c0_i32_7 : i32
    scf.if %15 {
      %c16_i32_12 = arith.constant 16 : i32
      %22 = arith.muli %arg2, %c16_i32_12 : i32
      %23 = tpu.iota {dimensions = array<i32: 1>} : vector<16x16xi32>
      %24 = vector.broadcast %22 : i32 to vector<16x16xi32>
      %25 = arith.addi %24, %23 : vector<16x16xi32>
      %c3_i32 = arith.constant 3 : i32
      %26 = vector.broadcast %c3_i32 : i32 to vector<16x16xi32>
      %27 = arith.cmpi slt, %25, %26 : vector<16x16xi32>
      %cst_13 = arith.constant -1.000000e+30 : f32
      %28 = vector.broadcast %cst_13 : f32 to vector<16x16xf32>
      %29 = arith.select %27, %12, %28 : vector<16x16xi1>, vector<16x16xf32>
      %c0_14 = arith.constant 0 : index
      %c0_15 = arith.constant 0 : index
      %30 = vector.load %arg8[%c0_14, %c0_15] : memref<16x1xf32, #tpu.memory_space<vmem>>, vector<16x1xf32>
      %cst_16 = arith.constant dense<0xFF800000> : vector<16xf32>
      %31 = vector.multi_reduction <maximumf>, %29, %cst_16 [1] : vector<16x16xf32> to vector<16xf32>
      %32 = vector.shape_cast %31 : vector<16xf32> to vector<16x1xf32>
      %33 = arith.maximumf %30, %32 : vector<16x1xf32>
      %34 = arith.subf %30, %33 : vector<16x1xf32>
      %35 = math.exp %34 : vector<16x1xf32>
      %36 = vector.broadcast %33 : vector<16x1xf32> to vector<16x16xf32>
      %37 = arith.subf %29, %36 : vector<16x16xf32>
      %38 = math.exp %37 : vector<16x16xf32>
      %c0_17 = arith.constant 0 : index
      %c0_18 = arith.constant 0 : index
      %39 = vector.load %arg9[%c0_17, %c0_18] : memref<16x1xf32, #tpu.memory_space<vmem>>, vector<16x1xf32>
      %40 = arith.mulf %35, %39 : vector<16x1xf32>
      %cst_19 = arith.constant dense<0.000000e+00> : vector<16xf32>
      %41 = vector.multi_reduction <add>, %38, %cst_19 [1] : vector<16x16xf32> to vector<16xf32>
      %42 = vector.shape_cast %41 : vector<16xf32> to vector<16x1xf32>
      %43 = arith.addf %40, %42 : vector<16x1xf32>
      %c0_20 = arith.constant 0 : index
      %c0_21 = arith.constant 0 : index
      %44 = vector.load %arg9[%c0_20, %c0_21] : memref<16x1xf32, #tpu.memory_space<vmem>>, vector<16x1xf32>
      tpu.vector_store %arg9[%c0_20, %c0_21], %43 {strides = array<i32>} : memref<16x1xf32, #tpu.memory_space<vmem>>, vector<16x1xf32>,
      %c0_22 = arith.constant 0 : index
      %c0_23 = arith.constant 0 : index
      %45 = vector.load %arg10[%c0_22, %c0_23] : memref<16x4xf32, #tpu.memory_space<vmem>>, vector<16x4xf32>
      %46 = vector.broadcast %35 : vector<16x1xf32> to vector<16x4xf32>
      %47 = arith.mulf %46, %45 : vector<16x4xf32>
      %cst_24 = arith.constant dense<0.000000e+00> : vector<16x4xf32>
      %48 = tpu.matmul %38, %10, %cst_24 {dimension_numbers = #tpu.dot_dimension_numbers<[1], [0], [0], [1], [0, 0, 1, 1], [], []>} : vector<16x16xf32>, vector<16x4xf32>, vector<16x4xf32> -> vector<16x4xf32>
      %49 = arith.addf %47, %48 : vector<16x4xf32>
      %c0_25 = arith.constant 0 : index
      %c0_26 = arith.constant 0 : index
      %50 = vector.load %arg10[%c0_25, %c0_26] : memref<16x4xf32, #tpu.memory_space<vmem>>, vector<16x4xf32>
      tpu.vector_store %arg10[%c0_25, %c0_26], %49 {strides = array<i32>} : memref<16x4xf32, #tpu.memory_space<vmem>>, vector<16x4xf32>,
      %c0_27 = arith.constant 0 : index
      %c0_28 = arith.constant 0 : index
      %51 = vector.load %arg8[%c0_27, %c0_28] : memref<16x1xf32, #tpu.memory_space<vmem>>, vector<16x1xf32>
      tpu.vector_store %arg8[%c0_27, %c0_28], %33 {strides = array<i32>} : memref<16x1xf32, #tpu.memory_space<vmem>>, vector<16x1xf32>,
    } else {
    }
    %c0_i32_8 = arith.constant 0 : i32
    %16 = arith.cmpi ne, %arg2, %c0_i32_8 : i32
    %17 = arith.extui %16 : i1 to i32
    %c0_i32_9 = arith.constant 0 : i32
    %18 = arith.cmpi ne, %17, %c0_i32_9 : i32
    scf.if %18 {
      %c0_12 = arith.constant 0 : index
      %c0_13 = arith.constant 0 : index
      %22 = vector.load %arg8[%c0_12, %c0_13] : memref<16x1xf32, #tpu.memory_space<vmem>>, vector<16x1xf32>
      %cst_14 = arith.constant dense<0xFF800000> : vector<16xf32>
      %23 = vector.multi_reduction <maximumf>, %12, %cst_14 [1] : vector<16x16xf32> to vector<16xf32>
      %24 = vector.shape_cast %23 : vector<16xf32> to vector<16x1xf32>
      %25 = arith.maximumf %22, %24 : vector<16x1xf32>
      %26 = arith.subf %22, %25 : vector<16x1xf32>
      %27 = math.exp %26 : vector<16x1xf32>
      %28 = vector.broadcast %25 : vector<16x1xf32> to vector<16x16xf32>
      %29 = arith.subf %12, %28 : vector<16x16xf32>
      %30 = math.exp %29 : vector<16x16xf32>
      %c0_15 = arith.constant 0 : index
      %c0_16 = arith.constant 0 : index
      %31 = vector.load %arg9[%c0_15, %c0_16] : memref<16x1xf32, #tpu.memory_space<vmem>>, vector<16x1xf32>
      %32 = arith.mulf %27, %31 : vector<16x1xf32>
      %cst_17 = arith.constant dense<0.000000e+00> : vector<16xf32>
      %33 = vector.multi_reduction <add>, %30, %cst_17 [1] : vector<16x16xf32> to vector<16xf32>
      %34 = vector.shape_cast %33 : vector<16xf32> to vector<16x1xf32>
      %35 = arith.addf %32, %34 : vector<16x1xf32>
      %c0_18 = arith.constant 0 : index
      %c0_19 = arith.constant 0 : index
      %36 = vector.load %arg9[%c0_18, %c0_19] : memref<16x1xf32, #tpu.memory_space<vmem>>, vector<16x1xf32>
      tpu.vector_store %arg9[%c0_18, %c0_19], %35 {strides = array<i32>} : memref<16x1xf32, #tpu.memory_space<vmem>>, vector<16x1xf32>,
      %c0_20 = arith.constant 0 : index
      %c0_21 = arith.constant 0 : index
      %37 = vector.load %arg10[%c0_20, %c0_21] : memref<16x4xf32, #tpu.memory_space<vmem>>, vector<16x4xf32>
      %38 = vector.broadcast %27 : vector<16x1xf32> to vector<16x4xf32>
      %39 = arith.mulf %38, %37 : vector<16x4xf32>
      %cst_22 = arith.constant dense<0.000000e+00> : vector<16x4xf32>
      %40 = tpu.matmul %30, %10, %cst_22 {dimension_numbers = #tpu.dot_dimension_numbers<[1], [0], [0], [1], [0, 0, 1, 1], [], []>} : vector<16x16xf32>, vector<16x4xf32>, vector<16x4xf32> -> vector<16x4xf32>
      %41 = arith.addf %39, %40 : vector<16x4xf32>
      %c0_23 = arith.constant 0 : index
      %c0_24 = arith.constant 0 : index
      %42 = vector.load %arg10[%c0_23, %c0_24] : memref<16x4xf32, #tpu.memory_space<vmem>>, vector<16x4xf32>
      tpu.vector_store %arg10[%c0_23, %c0_24], %41 {strides = array<i32>} : memref<16x4xf32, #tpu.memory_space<vmem>>, vector<16x4xf32>,
      %c0_25 = arith.constant 0 : index
      %c0_26 = arith.constant 0 : index
      %43 = vector.load %arg8[%c0_25, %c0_26] : memref<16x1xf32, #tpu.memory_space<vmem>>, vector<16x1xf32>
      tpu.vector_store %arg8[%c0_25, %c0_26], %25 {strides = array<i32>} : memref<16x1xf32, #tpu.memory_space<vmem>>, vector<16x1xf32>,
    } else {
    }
    %c0_i32_10 = arith.constant 0 : i32
    %19 = arith.cmpi eq, %arg2, %c0_i32_10 : i32
    %20 = arith.extui %19 : i1 to i32
    %c0_i32_11 = arith.constant 0 : i32
    %21 = arith.cmpi ne, %20, %c0_i32_11 : i32
    scf.if %21 {
      %c0_12 = arith.constant 0 : index
      %c0_13 = arith.constant 0 : index
      %22 = vector.load %arg9[%c0_12, %c0_13] : memref<16x1xf32, #tpu.memory_space<vmem>>, vector<16x1xf32>
      %23 = tpu.reciprocal %22 {approx = true} : vector<16x1xf32> -> vector<16x1xf32>
      %c0_14 = arith.constant 0 : index
      %c0_15 = arith.constant 0 : index
      %24 = vector.load %arg10[%c0_14, %c0_15] : memref<16x4xf32, #tpu.memory_space<vmem>>, vector<16x4xf32>
      %25 = vector.broadcast %23 : vector<16x1xf32> to vector<16x4xf32>
      %26 = arith.mulf %24, %25 : vector<16x4xf32>
      %c0_16 = arith.constant 0 : index
      %c0_17 = arith.constant 0 : index
      %c0_18 = arith.constant 0 : index
      %27 = vector.load %arg6[%c0_16, %c0_17, %c0_18] : memref<1x16x4xf32, #tpu.memory_space<vmem>>, vector<1x16x4xf32>
      %28 = vector.shape_cast %27 : vector<1x16x4xf32> to vector<16x4xf32>
      %29 = vector.shape_cast %26 : vector<16x4xf32> to vector<1x16x4xf32>
      tpu.vector_store %arg6[%c0_16, %c0_17, %c0_18], %29 {strides = array<i32>} : memref<1x16x4xf32, #tpu.memory_space<vmem>>, vector<1x16x4xf32>,
    } else {
    }
    return
  }
  func.func @transform_0(%arg0: i32, %arg1: i32, %arg2: i32) -> (i32, i32, i32) {
    %c0_i32 = arith.constant 0 : i32
    %c0_i32_0 = arith.constant 0 : i32
    return %arg0, %arg1, %c0_i32 : i32, i32, i32
  }
  func.func @transform_1(%arg0: i32, %arg1: i32, %arg2: i32) -> (i32, i32, i32) {
    %c0_i32 = arith.constant 0 : i32
    %c0_i32_0 = arith.constant 0 : i32
    %c0_i32_1 = arith.constant 0 : i32
    return %arg0, %c0_i32, %c0_i32_0 : i32, i32, i32
  }
  func.func @transform_2(%arg0: i32, %arg1: i32, %arg2: i32) -> (i32, i32, i32) {
    %c0_i32 = arith.constant 0 : i32
    %c0_i32_0 = arith.constant 0 : i32
    %c0_i32_1 = arith.constant 0 : i32
    return %arg0, %c0_i32, %c0_i32_0 : i32, i32, i32
  }
  func.func @transform_3(%arg0: i32, %arg1: i32, %arg2: i32) -> (i32, i32, i32) {
    %c0_i32 = arith.constant 0 : i32
    %c0_i32_0 = arith.constant 0 : i32
    return %arg0, %arg1, %c0_i32 : i32, i32, i32
  }
}

</mosaic_0001>

<llo_original>
// kernel: tpu_custom_call.1
$region0: #{tpu_custom_call.1}
  #allocation0 [shape = 'u32[]', space=smem, size = 0x4, offset = 0x4, fixed_abs, tag = 'smem constant byte address 0x4 - core index']
  #allocation1 [shape = 'u32[144,128]{1,0:T(1,128)}', space=vmem, size = 0x12000, scoped, tag = 'internal scratch']
  #allocation2 [shape = 'f32[16,4]{1,0:T(8,128)}', space=vmem, size = 0x2000, scoped, tag = 'scratch operand']
  #allocation3 [shape = 'f32[16,1]{1,0:T(8,128)}', space=vmem, size = 0x2000, scoped, tag = 'scratch operand']
  #allocation4 [shape = 'f32[16,1]{1,0:T(8,128)}', space=vmem, size = 0x2000, scoped, tag = 'scratch operand']
  #allocation5 [shape = 'f32[16,4]{1,0:T(8,128)}', space=vmem, size = 0x2000, scoped, tag = 'scratch operand']
  %s0 = inlined_call_operand.vmem [shape: f32[2,16,4], index: 0, kind: input, shape index: {}]
  %s1 = inlined_call_operand.vmem [shape: f32[2,16,4], index: 1, kind: input, shape index: {}]
  %s2 = inlined_call_operand.vmem [shape: f32[2,16,4], index: 2, kind: input, shape index: {}]
  %s3 = inlined_call_operand.vmem [shape: f32[2,16,4], index: 3, kind: output, shape index: {}]
  %s4 = sld [smem:[#allocation0]]
  $region61: #{tpu_custom_call.1} parent=0
    _
  %s6 = ssub.s32 1, %s4
  %s7 = scalar_select 0, %s6, %s4
  loop: start=0, step=1, limit=4
  $region2: #{tpu_custom_call.1} parent=0 // loop_pre_header
    _
  $region3: #{tpu_custom_call.1} parent=0 // loop_header
    %s9 = sphi 0, %s13
    %p10 = scmp.ge.s32.totalorder %s9, 4
    %s16 = sphi 0, %s35
    %s17 = sphi 0, %s31
    %s18 = sphi 0, %s27
    %s19 = sphi 0, %s16
    %s20 = sphi 0, %s17
    %s21 = sphi 0, %s18
    %s22 = sphi 0, %s19
    %s23 = sphi 0, %s20
    %s24 = sphi 0, %s21
    %s40 = sphi 0, %s42
    %s43 = sphi 0, %s40
    %s44 = sphi 0, %s43
    %s60 = sphi 0, %s44
    %s66 = sphi 0, %s68
    %s69 = sphi 0, %s66
    %s70 = sphi 0, %s69
    %s86 = sphi 0, %s70
    %s92 = sphi 0, %s94
    %s95 = sphi 0, %s92
    %s96 = sphi 0, %s95
    %s112 = sphi 0, %s96
    %s120 = sphi 0, %s122
    %s123 = sphi 0, %s120
    %s124 = sphi 0, %s123
    %s140 = sphi 0, %s124
  $region4: #{tpu_custom_call.1} parent=0 // loop_header_branch
    %12 = sbr.rel (%p10) target = $region8
  $region5: #{tpu_custom_call.1} parent=0 // loop_body
    %s14 = ssub.s32 %s9, 1
    %s15 = ssub.s32 %s9, 2
    %s25 = sadd.s32 1, %s18
    %p26 = scmp.ge.s32.totalorder %s25, 1
    %s27 = scalar_select %p26, 0, %s25
    %s28 = sadd.s32 1, %s17
    %s29 = scalar_select %p26, %s28, %s17
    %p30 = scmp.ge.s32.totalorder %s29, 1
    %s31 = scalar_select %p30, 0, %s29
    %s32 = sadd.s32 1, %s16
    %s33 = scalar_select %p30, %s32, %s16
    %p34 = scmp.ge.s32.totalorder %s33, 2
    %s35 = scalar_select %p34, 0, %s33
    %s36 = ssub.s32 %s16, %s35
    %s37 = ssub.s32 %s17, %s31
    %s38 = sor.u32 %s36, %s37
    %p39 = scmp.eq.s32.totalorder %s38, 0
    %s41 = sadd.s32 %s40, 1
    %s42 = scalar_select %p39, %s40, %s41
    %p45 = pneg %p39
    %p46 = scmp.eq.s32.totalorder %s9, 1
    %p47 = por %p45, %p46
    %p48 = scmp.ne.s32.totalorder %s40, %s43
    %p49 = scmp.eq.s32.totalorder %s9, 0
    %p50 = por %p48, %p49
    %p51 = scmp.ne.s32.totalorder %s40, %s43
    %p52 = scmp.eq.s32.totalorder %s14, 1
    %p53 = por %p51, %p52
    %p54 = scmp.ne.s32.totalorder %s43, %s44
    %p55 = scmp.eq.s32.totalorder %s14, 0
    %p56 = por %p54, %p55
    %p57 = scmp.ne.s32.totalorder %s43, %s44
    %p58 = scmp.eq.s32.totalorder %s15, 1
    %p59 = por %p57, %p58
    %p61 = scmp.ne.s32.totalorder %s44, %s60
    %p62 = scmp.eq.s32.totalorder %s15, 0
    %p63 = por %p61, %p62
    %s64 = ssub.s32 %s16, %s35
    %p65 = scmp.eq.s32.totalorder %s64, 0
    %s67 = sadd.s32 %s66, 1
    %s68 = scalar_select %p65, %s66, %s67
    %p71 = pneg %p65
    %p72 = scmp.eq.s32.totalorder %s9, 1
    %p73 = por %p71, %p72
    %p74 = scmp.ne.s32.totalorder %s66, %s69
    %p75 = scmp.eq.s32.totalorder %s9, 0
    %p76 = por %p74, %p75
    %p77 = scmp.ne.s32.totalorder %s66, %s69
    %p78 = scmp.eq.s32.totalorder %s14, 1
    %p79 = por %p77, %p78
    %p80 = scmp.ne.s32.totalorder %s69, %s70
    %p81 = scmp.eq.s32.totalorder %s14, 0
    %p82 = por %p80, %p81
    %p83 = scmp.ne.s32.totalorder %s69, %s70
    %p84 = scmp.eq.s32.totalorder %s15, 1
    %p85 = por %p83, %p84
    %p87 = scmp.ne.s32.totalorder %s70, %s86
    %p88 = scmp.eq.s32.totalorder %s15, 0
    %p89 = por %p87, %p88
    %s90 = ssub.s32 %s16, %s35
    %p91 = scmp.eq.s32.totalorder %s90, 0
    %s93 = sadd.s32 %s92, 1
    %s94 = scalar_select %p91, %s92, %s93
    %p97 = pneg %p91
    %p98 = scmp.eq.s32.totalorder %s9, 1
    %p99 = por %p97, %p98
    %p100 = scmp.ne.s32.totalorder %s92, %s95
    %p101 = scmp.eq.s32.totalorder %s9, 0
    %p102 = por %p100, %p101
    %p103 = scmp.ne.s32.totalorder %s92, %s95
    %p104 = scmp.eq.s32.totalorder %s14, 1
    %p105 = por %p103, %p104
    %p106 = scmp.ne.s32.totalorder %s95, %s96
    %p107 = scmp.eq.s32.totalorder %s14, 0
    %p108 = por %p106, %p107
    %p109 = scmp.ne.s32.totalorder %s95, %s96
    %p110 = scmp.eq.s32.totalorder %s15, 1
    %p111 = por %p109, %p110
    %p113 = scmp.ne.s32.totalorder %s96, %s112
    %p114 = scmp.eq.s32.totalorder %s15, 0
    %p115 = por %p113, %p114
    %s116 = ssub.s32 %s16, %s35
    %s117 = ssub.s32 %s17, %s31
    %s118 = sor.u32 %s116, %s117
    %p119 = scmp.eq.s32.totalorder %s118, 0
    %s121 = sadd.s32 %s120, 1
    %s122 = scalar_select %p119, %s120, %s121
    %p125 = pneg %p119
    %p126 = scmp.eq.s32.totalorder %s9, 1
    %p127 = por %p125, %p126
    %p128 = scmp.ne.s32.totalorder %s120, %s123
    %p129 = scmp.eq.s32.totalorder %s9, 0
    %p130 = por %p128, %p129
    %p131 = scmp.ne.s32.totalorder %s120, %s123
    %p132 = scmp.eq.s32.totalorder %s14, 1
    %p133 = por %p131, %p132
    %p134 = scmp.ne.s32.totalorder %s123, %s124
    %p135 = scmp.eq.s32.totalorder %s14, 0
    %p136 = por %p134, %p135
    %p137 = scmp.ne.s32.totalorder %s123, %s124
    %p138 = scmp.eq.s32.totalorder %s15, 1
    %p139 = por %p137, %p138
    %p141 = scmp.ne.s32.totalorder %s124, %s140
    %p142 = scmp.eq.s32.totalorder %s15, 0
    %p143 = por %p141, %p142
    %p144 = scmp.le.s32.totalorder 1, %s9
    %p145 = scmp.lt.s32.totalorder %s9, 3
    %p146 = pnand %p144, %p145
    %p147 = pneg %p146
    // Predicated region
    $region9: #{tpu_custom_call.1} parent=5 // pred_check
      _
    $region10: #{tpu_custom_call.1} parent=5 // pred_check_branch
      %149 = sbr.rel (%p146) target = $region12
    $region11: #{tpu_custom_call.1} parent=5 // pred_region
      %s150 = ssub.s32 %s9, 1
    $region12: #{tpu_custom_call.1} parent=5 // pred_fallthru
      _
    %p151 = scmp.lt.s32.totalorder %s9, 2
    // Predicated region
    $region13: #{tpu_custom_call.1} parent=5 // pred_check
      %p152 = pneg %p151
    $region14: #{tpu_custom_call.1} parent=5 // pred_check_branch
      %154 = sbr.rel (%p152) target = $region16
    $region15: #{tpu_custom_call.1} parent=5 // pred_region
      // Predicated region
      $region17: #{tpu_custom_call.1} parent=15 // pred_check
        %p155 = pneg %p50
      $region18: #{tpu_custom_call.1} parent=15 // pred_check_branch
        %157 = sbr.rel (%p155) target = $region20
      $region19: #{tpu_custom_call.1} parent=15 // pred_region
        %s158 = smul.u32 2, %s17
        %p159 = scmp.lt.s32.totalorder %s16, 1
        %s160 = scalar_select %p159, %s16, 1
        %p161 = scmp.lt.s32.totalorder %s158, 1
        %s162 = scalar_select %p161, %s158, 1
        %s163 = smul.addr %s160, 2
        %s164 = sadd.s32 %s162, %s163
        %s165 = smul.addr %s164, 8
        %s166 = scalar_lea.vmem %s0, %s165
        %s167 = smul.u32 2, %s17
      $region20: #{tpu_custom_call.1} parent=15 // pred_fallthru
        _
      // Predicated region
      $region21: #{tpu_custom_call.1} parent=15 // pred_check
        %p168 = pneg %p76
      $region22: #{tpu_custom_call.1} parent=15 // pred_check_branch
        %170 = sbr.rel (%p168) target = $region24
      $region23: #{tpu_custom_call.1} parent=15 // pred_region
        %p171 = scmp.lt.s32.totalorder %s16, 1
        %s172 = scalar_select %p171, %s16, 1
        %s173 = smul.addr %s172, 2
        %s174 = smul.addr %s173, 8
        %s175 = scalar_lea.vmem %s1, %s174
      $region24: #{tpu_custom_call.1} parent=15 // pred_fallthru
        _
      // Predicated region
      $region25: #{tpu_custom_call.1} parent=15 // pred_check
        %p176 = pneg %p102
      $region26: #{tpu_custom_call.1} parent=15 // pred_check_branch
        %178 = sbr.rel (%p176) target = $region28
      $region27: #{tpu_custom_call.1} parent=15 // pred_region
        %p179 = scmp.lt.s32.totalorder %s16, 1
        %s180 = scalar_select %p179, %s16, 1
        %s181 = smul.addr %s180, 2
        %s182 = smul.addr %s181, 8
        %s183 = scalar_lea.vmem %s2, %s182
      $region28: #{tpu_custom_call.1} parent=15 // pred_fallthru
        _
    $region16: #{tpu_custom_call.1} parent=5 // pred_fallthru
      _
    %p184 = scmp.le.s32.totalorder 1, %s9
    %p185 = scmp.lt.s32.totalorder %s9, 3
    %p186 = pnand %p184, %p185
    %p187 = pneg %p186
    // Predicated region
    $region29: #{tpu_custom_call.1} parent=5 // pred_check
      _
    $region30: #{tpu_custom_call.1} parent=5 // pred_check_branch
      %189 = sbr.rel (%p186) target = $region32
    $region31: #{tpu_custom_call.1} parent=5 // pred_region
      %s190 = ssub.s32 %s9, 1
      %s191 = smul.u32 2, %s20
      %p192 = scmp.lt.s32.totalorder %s19, 1
      %s193 = scalar_select %p192, %s19, 1
      %p194 = scmp.lt.s32.totalorder %s191, 1
      %s195 = scalar_select %p194, %s191, 1
      %s196 = smul.addr %s193, 2
      %s197 = sadd.s32 %s195, %s196
      %s198 = smul.addr %s197, 8
      %s199 = scalar_lea.vmem %s0, %s198
      %p200 = pneg %p56
      %p201 = pneg %p53
      %p202 = scmp.lt.s32.totalorder %s19, 1
      %s203 = scalar_select %p202, %s19, 1
      %s204 = smul.addr %s203, 2
      %s205 = smul.addr %s204, 8
      %s206 = scalar_lea.vmem %s1, %s205
      %p207 = pneg %p82
      %p208 = pneg %p79
      %p209 = scmp.lt.s32.totalorder %s19, 1
      %s210 = scalar_select %p209, %s19, 1
      %s211 = smul.addr %s210, 2
      %s212 = smul.addr %s211, 8
      %s213 = scalar_lea.vmem %s2, %s212
      %p214 = pneg %p108
      %p215 = pneg %p105
      %p216 = pneg %p136
      %p217 = pneg %p133
      %s218 = smul.u32 2, %s20
      %p219 = scmp.lt.s32.totalorder %s19, 1
      %s220 = scalar_select %p219, %s19, 1
      %p221 = scmp.lt.s32.totalorder %s218, 1
      %s222 = scalar_select %p221, %s218, 1
      %s223 = smul.addr %s220, 2
      %s224 = sadd.s32 %s222, %s223
      %s225 = smul.addr %s224, 8
      %s226 = scalar_lea.vmem %s3, %s225
      %s227 = smul.u32 2, %s20
      %p228 = scmp.lt.s32.totalorder %s19, 1
      %s229 = scalar_select %p228, %s19, 1
      %p230 = scmp.lt.s32.totalorder %s227, 1
      %s231 = scalar_select %p230, %s227, 1
      %s232 = smul.addr %s229, 2
      %s233 = sadd.s32 %s231, %s232
      %s234 = smul.addr %s233, 8
      %s235 = scalar_lea.vmem %s0, %s234
      %s236 = smul.u32 2, %s20
      %p237 = scmp.lt.s32.totalorder %s19, 1
      %s238 = scalar_select %p237, %s19, 1
      %s239 = smul.addr %s238, 2
      %s240 = smul.addr %s239, 8
      %s241 = scalar_lea.vmem %s1, %s240
      %p242 = scmp.lt.s32.totalorder %s19, 1
      %s243 = scalar_select %p242, %s19, 1
      %s244 = smul.addr %s243, 2
      %s245 = smul.addr %s244, 8
      %s246 = scalar_lea.vmem %s2, %s245
      %s247 = smul.u32 2, %s20
      %p248 = scmp.lt.s32.totalorder %s19, 1
      %s249 = scalar_select %p248, %s19, 1
      %p250 = scmp.lt.s32.totalorder %s247, 1
      %s251 = scalar_select %p250, %s247, 1
      %s252 = smul.addr %s249, 2
      %s253 = sadd.s32 %s251, %s252
      %s254 = smul.addr %s253, 8
      %s255 = scalar_lea.vmem %s3, %s254
      %s256 = smul.u32 2, %s20
      %p257 = scmp.eq.s32.totalorder %s21, 0
      // Predicated region
      $region33: #{tpu_custom_call.1} parent=31 // pred_check
        %p258 = pneg %p257
      $region34: #{tpu_custom_call.1} parent=31 // pred_check_branch
        %260 = sbr.rel (%p258) target = $region36
      $region35: #{tpu_custom_call.1} parent=31 // pred_region
        %vm261 = vcmask 7168
        %262 = vst.msk [vmem:[#allocation3] sm:$0xff] %vm261, -1e+30
        %263 = vst.msk [vmem:[#allocation3 + $0x8] sm:$0xff] %vm261, -1e+30
        %264 = vst.msk [vmem:[#allocation4] sm:$0xff] %vm261, 0.0
        %265 = vst.msk [vmem:[#allocation4 + $0x8] sm:$0xff] %vm261, 0.0
        %vm266 = vcmask 31744
        %267 = vst.msk [vmem:[#allocation5] sm:$0xff] %vm266, 0.0
        %268 = vst.msk [vmem:[#allocation5 + $0x8] sm:$0xff] %vm266, 0.0
        %v269 = vld [vmem:[%s235] sm:$0xff]
        %v270 = vld [vmem:[%s235 + $0x8] sm:$0xff]
        %271 = vst.msk [vmem:[#allocation2] sm:$0xff] %vm266, %v269
        %272 = vst.msk [vmem:[#allocation2 + $0x8] sm:$0xff] %vm266, %v270
      $region36: #{tpu_custom_call.1} parent=31 // pred_fallthru
        _
      %s273 = smul.u32 %s21, 16
      %s274 = scalar_lea.vmem %s241, %s273
      %v275 = vld [vmem:[%s274] sm:$0xff]
      %v276 = vld [vmem:[%s274 + $0x8] sm:$0xff]
      %s277 = scalar_lea.vmem %s246, %s273
      %v278 = vld [vmem:[%s277] sm:$0xff]
      %v279 = vld [vmem:[%s277 + $0x8] sm:$0xff]
      %v280 = vld [vmem:[#allocation2] sm:$0xff]
      %v281 = vld [vmem:[#allocation2 + $0x8] sm:$0xff]
      %vm282 = vcmask 31744
      %v284 = vsel %vm282, %v280, 0
      %v287 = vsel %vm282, %v281, 0
      %v290 = vsel %vm282, %v275, 0
      %v293 = vsel %vm282, %v276, 0
      %295 = vmatprep.subr.mxu0 0.0
      %296 = vmatpush1.xpose.msra.mxu0 0.0
      %297 = vmatprep.subr.mxu0 0.0
      %298 = vmatpush1.xpose.msra.mxu0 0.0
      %299 = vmatprep.subr.mxu0 0.0
      %300 = vmatpush1.xpose.msra.mxu0 0.0
      %301 = vmatprep.subr.mxu0 0.0
      %302 = vmatpush1.xpose.msra.mxu0 0.0
      %303 = vmatprep.subr.mxu0 0.0
      %304 = vmatpush1.xpose.msra.mxu0 0.0
      %305 = vmatprep.subr.mxu0 0.0
      %306 = vmatpush1.xpose.msra.mxu0 0.0
      %307 = vmatprep.subr.mxu0 0.0
      %308 = vmatpush1.xpose.msra.mxu0 0.0
      %309 = vmatprep.subr.mxu0 0.0
      %310 = vmatpush1.xpose.msra.mxu0 0.0
      %311 = vmatprep.subr.mxu0 0.0
      %312 = vmatpush1.xpose.msra.mxu0 0.0
      %313 = vmatprep.subr.mxu0 0.0
      %314 = vmatpush1.xpose.msra.mxu0 0.0
      %315 = vmatprep.subr.mxu0 0.0
      %316 = vmatpush1.xpose.msra.mxu0 0.0
      %317 = vmatprep.subr.mxu0 0.0
      %318 = vmatpush1.xpose.msra.mxu0 0.0
      %319 = vmatprep.subr.mxu0 0.0
      %320 = vmatpush1.xpose.msra.mxu0 0.0
      %321 = vmatprep.subr.mxu0 0.0
      %322 = vmatpush1.xpose.msra.mxu0 0.0
      %323 = vmatprep.subr.mxu0 0.0
      %324 = vmatpush1.xpose.msra.mxu0 %v293
      %325 = vmatprep.subr.mxu0 0.0
      %326 = vmatpush1.xpose.msra.mxu0 %v290
      %327 = vmatprep.subr.mxu0 0.0
      %328 = vmatpush2.xpose.msra.mxu0 0.0
      %329 = vmatprep.subr.mxu0 0.0
      %330 = vmatpush2.xpose.msra.mxu0 0.0
      %331 = vmatprep.subr.mxu0 0.0
      %332 = vmatpush2.xpose.msra.mxu0 0.0
      %333 = vmatprep.subr.mxu0 0.0
      %334 = vmatpush2.xpose.msra.mxu0 0.0
      %335 = vmatprep.subr.mxu0 0.0
      %336 = vmatpush2.xpose.msra.mxu0 0.0
      %337 = vmatprep.subr.mxu0 0.0
      %338 = vmatpush2.xpose.msra.mxu0 0.0
      %339 = vmatprep.subr.mxu0 0.0
      %340 = vmatpush2.xpose.msra.mxu0 0.0
      %341 = vmatprep.subr.mxu0 0.0
      %342 = vmatpush2.xpose.msra.mxu0 0.0
      %343 = vmatprep.subr.mxu0 0.0
      %344 = vmatpush2.xpose.msra.mxu0 0.0
      %345 = vmatprep.subr.mxu0 0.0
      %346 = vmatpush2.xpose.msra.mxu0 0.0
      %347 = vmatprep.subr.mxu0 0.0
      %348 = vmatpush2.xpose.msra.mxu0 0.0
      %349 = vmatprep.subr.mxu0 0.0
      %350 = vmatpush2.xpose.msra.mxu0 0.0
      %351 = vmatprep.subr.mxu0 0.0
      %352 = vmatpush2.xpose.msra.mxu0 0.0
      %353 = vmatprep.subr.mxu0 0.0
      %354 = vmatpush2.xpose.msra.mxu0 0.0
      %355 = vmatprep.subr.mxu0 0.0
      %356 = vmatpush2.xpose.msra.mxu0 0.0
      %357 = vmatprep.subr.mxu0 0.0
      %358 = vmatpush2.xpose.msra.mxu0 0.0
      %359 = vmatprep.mubr.f32.mxu0 0.0
      %360 = vmatmul.mubr.f32.gmra.mxu0 %v284
      %v361 = vpop.f32.mrf.mxu0
      %v362 = vadd.f32 0.0, %v361
      %v363 = vpop.f32.mrf.mxu0
      %364 = vmatprep.mubr.f32.mxu0 0.0
      %365 = vmatmul.mubr.f32.gmra.mxu0 %v287
      %v366 = vpop.f32.mrf.mxu0
      %v367 = vadd.f32 0.0, %v366
      %v368 = vpop.f32.mrf.mxu0
      %369 = vdwg.mxu0
      // Predicated region
      $region37: #{tpu_custom_call.1} parent=31 // pred_check
        %p370 = pneg %p257
      $region38: #{tpu_custom_call.1} parent=31 // pred_check_branch
        %372 = sbr.rel (%p370) target = $region40
      $region39: #{tpu_custom_call.1} parent=31 // pred_region
        %v373 = vlaneseq
        %v374 = vand.u32 %v373, 127
        %v375 = vstv %s273
        %v376 = vadd.s32 %v375, %v374
        %vm377 = vcmp.lt.s32.totalorder %v376, 3
        %v378 = vsel %vm377, %v362, -1e+30
        %v379 = vsel %vm377, %v367, -1e+30
        %v380 = vld [vmem:[#allocation3] sm:$0xff]
        %v381 = vld [vmem:[#allocation3 + $0x8] sm:$0xff]
        %vm382 = vcmask 130048
        %v383 = vsel %vm382, %v378, -inf
        %384 = vmax.xlane.f32.xlu0 %v383
        %v385 = vpop.xlane.xlu0 %384
        %v386 = vsel %vm382, %v379, -inf
        %387 = vmax.xlane.f32.xlu0 %v386
        %v388 = vpop.xlane.xlu0 %387
        %v389 = vmax.f32 %v380, %v385
        %v390 = vmax.f32 %v381, %v388
        %v391 = vsub.f32 %v380, %v389
        %v392 = vsub.f32 %v381, %v390
        %v393 = vmul.f32 %v391, 1.442695
        %v394 = vpow.pop %v393
        %v395 = vmul.f32 %v392, 1.442695
        %v396 = vpow.pop %v395
        %398 = vset.pattern.permute.xlu0 0
        %399 = vperm.xlu0 %398, %v389
        %v400 = vpop.permute.xlu0 %399
        %403 = vset.pattern.permute.xlu0 0
        %404 = vperm.xlu0 %403, %v390
        %v405 = vpop.permute.xlu0 %404
        %v407 = vsub.f32 %v378, %v400
        %v408 = vsub.f32 %v379, %v405
        %v409 = vmul.f32 %v407, 1.442695
        %v410 = vpow.pop %v409
        %v411 = vmul.f32 %v408, 1.442695
        %v412 = vpow.pop %v411
        %v413 = vld [vmem:[#allocation4] sm:$0xff]
        %v414 = vld [vmem:[#allocation4 + $0x8] sm:$0xff]
        %v415 = vmul.f32 %v394, %v413
        %v416 = vmul.f32 %v396, %v414
        %v417 = vsel %vm382, %v410, 0.0
        %418 = vadd.xlane.f32.xlu0 %v417
        %v419 = vpop.xlane.xlu0 %418
        %v420 = vsel %vm382, %v412, 0.0
        %421 = vadd.xlane.f32.xlu0 %v420
        %v422 = vpop.xlane.xlu0 %421
        %v423 = vadd.f32 %v415, %v419
        %v424 = vadd.f32 %v416, %v422
        %vm425 = vcmask 7168
        %426 = vst.msk [vmem:[#allocation4] sm:$0xff] %vm425, %v423
        %427 = vst.msk [vmem:[#allocation4 + $0x8] sm:$0xff] %vm425, %v424
        %v428 = vld [vmem:[#allocation5] sm:$0xff]
        %v429 = vld [vmem:[#allocation5 + $0x8] sm:$0xff]
        %431 = vset.pattern.permute.xlu0 0
        %432 = vperm.xlu0 %431, %v394
        %v433 = vpop.permute.xlu0 %432
        %436 = vset.pattern.permute.xlu0 0
        %437 = vperm.xlu0 %436, %v396
        %v438 = vpop.permute.xlu0 %437
        %v440 = vmul.f32 %v433, %v428
        %v441 = vmul.f32 %v438, %v429
        %v443 = vsel %vm382, %v410, 0
        %v446 = vsel %vm382, %v412, 0
        %448 = vmatprep.subr.mxu0 0.0
        %449 = vmatpush1.msra.mxu0 0.0
        %450 = vmatprep.subr.mxu0 0.0
        %451 = vmatpush1.msra.mxu0 0.0
        %452 = vmatprep.subr.mxu0 0.0
        %453 = vmatpush1.msra.mxu0 0.0
        %454 = vmatprep.subr.mxu0 0.0
        %455 = vmatpush1.msra.mxu0 0.0
        %456 = vmatprep.subr.mxu0 0.0
        %457 = vmatpush1.msra.mxu0 0.0
        %458 = vmatprep.subr.mxu0 0.0
        %459 = vmatpush1.msra.mxu0 0.0
        %460 = vmatprep.subr.mxu0 0.0
        %461 = vmatpush1.msra.mxu0 0.0
        %462 = vmatprep.subr.mxu0 0.0
        %463 = vmatpush1.msra.mxu0 0.0
        %464 = vmatprep.subr.mxu0 0.0
        %465 = vmatpush1.msra.mxu0 0.0
        %466 = vmatprep.subr.mxu0 0.0
        %467 = vmatpush1.msra.mxu0 0.0
        %468 = vmatprep.subr.mxu0 0.0
        %469 = vmatpush1.msra.mxu0 0.0
        %470 = vmatprep.subr.mxu0 0.0
        %471 = vmatpush1.msra.mxu0 0.0
        %472 = vmatprep.subr.mxu0 0.0
        %473 = vmatpush1.msra.mxu0 0.0
        %474 = vmatprep.subr.mxu0 0.0
        %475 = vmatpush1.msra.mxu0 0.0
        %476 = vmatprep.subr.mxu0 0.0
        %477 = vmatpush1.msra.mxu0 %v279
        %478 = vmatprep.subr.mxu0 0.0
        %479 = vmatpush1.msra.mxu0 %v278
        %480 = vmatprep.subr.mxu0 0.0
        %481 = vmatpush2.msra.mxu0 0.0
        %482 = vmatprep.subr.mxu0 0.0
        %483 = vmatpush2.msra.mxu0 0.0
        %484 = vmatprep.subr.mxu0 0.0
        %485 = vmatpush2.msra.mxu0 0.0
        %486 = vmatprep.subr.mxu0 0.0
        %487 = vmatpush2.msra.mxu0 0.0
        %488 = vmatprep.subr.mxu0 0.0
        %489 = vmatpush2.msra.mxu0 0.0
        %490 = vmatprep.subr.mxu0 0.0
        %491 = vmatpush2.msra.mxu0 0.0
        %492 = vmatprep.subr.mxu0 0.0
        %493 = vmatpush2.msra.mxu0 0.0
        %494 = vmatprep.subr.mxu0 0.0
        %495 = vmatpush2.msra.mxu0 0.0
        %496 = vmatprep.subr.mxu0 0.0
        %497 = vmatpush2.msra.mxu0 0.0
        %498 = vmatprep.subr.mxu0 0.0
        %499 = vmatpush2.msra.mxu0 0.0
        %500 = vmatprep.subr.mxu0 0.0
        %501 = vmatpush2.msra.mxu0 0.0
        %502 = vmatprep.subr.mxu0 0.0
        %503 = vmatpush2.msra.mxu0 0.0
        %504 = vmatprep.subr.mxu0 0.0
        %505 = vmatpush2.msra.mxu0 0.0
        %506 = vmatprep.subr.mxu0 0.0
        %507 = vmatpush2.msra.mxu0 0.0
        %508 = vmatprep.subr.mxu0 0.0
        %509 = vmatpush2.msra.mxu0 0.0
        %510 = vmatprep.subr.mxu0 0.0
        %511 = vmatpush2.msra.mxu0 0.0
        %512 = vmatprep.mubr.f32.mxu0 0.0
        %513 = vmatmul.mubr.f32.gmra.mxu0 %v443
        %v514 = vpop.f32.mrf.mxu0
        %v515 = vadd.f32 0.0, %v514
        %v516 = vpop.f32.mrf.mxu0
        %517 = vmatprep.mubr.f32.mxu0 0.0
        %518 = vmatmul.mubr.f32.gmra.mxu0 %v446
        %v519 = vpop.f32.mrf.mxu0
        %v520 = vadd.f32 0.0, %v519
        %v521 = vpop.f32.mrf.mxu0
        %522 = vdwg.mxu0
        %v523 = vadd.f32 %v440, %v515
        %v524 = vadd.f32 %v441, %v520
        %525 = vst.msk [vmem:[#allocation5] sm:$0xff] %vm282, %v523
        %526 = vst.msk [vmem:[#allocation5 + $0x8] sm:$0xff] %vm282, %v524
        %527 = vst.msk [vmem:[#allocation3] sm:$0xff] %vm425, %v389
        %528 = vst.msk [vmem:[#allocation3 + $0x8] sm:$0xff] %vm425, %v390
      $region40: #{tpu_custom_call.1} parent=31 // pred_fallthru
        _
      %p529 = scmp.ne.s32.totalorder %s21, 0
      // Predicated region
      $region41: #{tpu_custom_call.1} parent=31 // pred_check
        %p530 = pneg %p529
      $region42: #{tpu_custom_call.1} parent=31 // pred_check_branch
        %532 = sbr.rel (%p530) target = $region44
      $region43: #{tpu_custom_call.1} parent=31 // pred_region
        %v533 = vld [vmem:[#allocation3] sm:$0xff]
        %v534 = vld [vmem:[#allocation3 + $0x8] sm:$0xff]
        %vm535 = vcmask 130048
        %v536 = vsel %vm535, %v362, -inf
        %537 = vmax.xlane.f32.xlu0 %v536
        %v538 = vpop.xlane.xlu0 %537
        %v539 = vsel %vm535, %v367, -inf
        %540 = vmax.xlane.f32.xlu0 %v539
        %v541 = vpop.xlane.xlu0 %540
        %v542 = vmax.f32 %v533, %v538
        %v543 = vmax.f32 %v534, %v541
        %v544 = vsub.f32 %v533, %v542
        %v545 = vsub.f32 %v534, %v543
        %v546 = vmul.f32 %v544, 1.442695
        %v547 = vpow.pop %v546
        %v548 = vmul.f32 %v545, 1.442695
        %v549 = vpow.pop %v548
        %551 = vset.pattern.permute.xlu0 0
        %552 = vperm.xlu0 %551, %v542
        %v553 = vpop.permute.xlu0 %552
        %556 = vset.pattern.permute.xlu0 0
        %557 = vperm.xlu0 %556, %v543
        %v558 = vpop.permute.xlu0 %557
        %v560 = vsub.f32 %v362, %v553
        %v561 = vsub.f32 %v367, %v558
        %v562 = vmul.f32 %v560, 1.442695
        %v563 = vpow.pop %v562
        %v564 = vmul.f32 %v561, 1.442695
        %v565 = vpow.pop %v564
        %v566 = vld [vmem:[#allocation4] sm:$0xff]
        %v567 = vld [vmem:[#allocation4 + $0x8] sm:$0xff]
        %v568 = vmul.f32 %v547, %v566
        %v569 = vmul.f32 %v549, %v567
        %v570 = vsel %vm535, %v563, 0.0
        %571 = vadd.xlane.f32.xlu0 %v570
        %v572 = vpop.xlane.xlu0 %571
        %v573 = vsel %vm535, %v565, 0.0
        %574 = vadd.xlane.f32.xlu0 %v573
        %v575 = vpop.xlane.xlu0 %574
        %v576 = vadd.f32 %v568, %v572
        %v577 = vadd.f32 %v569, %v575
        %vm578 = vcmask 7168
        %579 = vst.msk [vmem:[#allocation4] sm:$0xff] %vm578, %v576
        %580 = vst.msk [vmem:[#allocation4 + $0x8] sm:$0xff] %vm578, %v577
        %v581 = vld [vmem:[#allocation5] sm:$0xff]
        %v582 = vld [vmem:[#allocation5 + $0x8] sm:$0xff]
        %584 = vset.pattern.permute.xlu0 0
        %585 = vperm.xlu0 %584, %v547
        %v586 = vpop.permute.xlu0 %585
        %589 = vset.pattern.permute.xlu0 0
        %590 = vperm.xlu0 %589, %v549
        %v591 = vpop.permute.xlu0 %590
        %v593 = vmul.f32 %v586, %v581
        %v594 = vmul.f32 %v591, %v582
        %v596 = vsel %vm535, %v563, 0
        %v599 = vsel %vm535, %v565, 0
        %601 = vmatprep.subr.mxu0 0.0
        %602 = vmatpush1.msra.mxu0 0.0
        %603 = vmatprep.subr.mxu0 0.0
        %604 = vmatpush1.msra.mxu0 0.0
        %605 = vmatprep.subr.mxu0 0.0
        %606 = vmatpush1.msra.mxu0 0.0
        %607 = vmatprep.subr.mxu0 0.0
        %608 = vmatpush1.msra.mxu0 0.0
        %609 = vmatprep.subr.mxu0 0.0
        %610 = vmatpush1.msra.mxu0 0.0
        %611 = vmatprep.subr.mxu0 0.0
        %612 = vmatpush1.msra.mxu0 0.0
        %613 = vmatprep.subr.mxu0 0.0
        %614 = vmatpush1.msra.mxu0 0.0
        %615 = vmatprep.subr.mxu0 0.0
        %616 = vmatpush1.msra.mxu0 0.0
        %617 = vmatprep.subr.mxu0 0.0
        %618 = vmatpush1.msra.mxu0 0.0
        %619 = vmatprep.subr.mxu0 0.0
        %620 = vmatpush1.msra.mxu0 0.0
        %621 = vmatprep.subr.mxu0 0.0
        %622 = vmatpush1.msra.mxu0 0.0
        %623 = vmatprep.subr.mxu0 0.0
        %624 = vmatpush1.msra.mxu0 0.0
        %625 = vmatprep.subr.mxu0 0.0
        %626 = vmatpush1.msra.mxu0 0.0
        %627 = vmatprep.subr.mxu0 0.0
        %628 = vmatpush1.msra.mxu0 0.0
        %629 = vmatprep.subr.mxu0 0.0
        %630 = vmatpush1.msra.mxu0 %v279
        %631 = vmatprep.subr.mxu0 0.0
        %632 = vmatpush1.msra.mxu0 %v278
        %633 = vmatprep.subr.mxu0 0.0
        %634 = vmatpush2.msra.mxu0 0.0
        %635 = vmatprep.subr.mxu0 0.0
        %636 = vmatpush2.msra.mxu0 0.0
        %637 = vmatprep.subr.mxu0 0.0
        %638 = vmatpush2.msra.mxu0 0.0
        %639 = vmatprep.subr.mxu0 0.0
        %640 = vmatpush2.msra.mxu0 0.0
        %641 = vmatprep.subr.mxu0 0.0
        %642 = vmatpush2.msra.mxu0 0.0
        %643 = vmatprep.subr.mxu0 0.0
        %644 = vmatpush2.msra.mxu0 0.0
        %645 = vmatprep.subr.mxu0 0.0
        %646 = vmatpush2.msra.mxu0 0.0
        %647 = vmatprep.subr.mxu0 0.0
        %648 = vmatpush2.msra.mxu0 0.0
        %649 = vmatprep.subr.mxu0 0.0
        %650 = vmatpush2.msra.mxu0 0.0
        %651 = vmatprep.subr.mxu0 0.0
        %652 = vmatpush2.msra.mxu0 0.0
        %653 = vmatprep.subr.mxu0 0.0
        %654 = vmatpush2.msra.mxu0 0.0
        %655 = vmatprep.subr.mxu0 0.0
        %656 = vmatpush2.msra.mxu0 0.0
        %657 = vmatprep.subr.mxu0 0.0
        %658 = vmatpush2.msra.mxu0 0.0
        %659 = vmatprep.subr.mxu0 0.0
        %660 = vmatpush2.msra.mxu0 0.0
        %661 = vmatprep.subr.mxu0 0.0
        %662 = vmatpush2.msra.mxu0 0.0
        %663 = vmatprep.subr.mxu0 0.0
        %664 = vmatpush2.msra.mxu0 0.0
        %665 = vmatprep.mubr.f32.mxu0 0.0
        %666 = vmatmul.mubr.f32.gmra.mxu0 %v596
        %v667 = vpop.f32.mrf.mxu0
        %v668 = vadd.f32 0.0, %v667
        %v669 = vpop.f32.mrf.mxu0
        %670 = vmatprep.mubr.f32.mxu0 0.0
        %671 = vmatmul.mubr.f32.gmra.mxu0 %v599
        %v672 = vpop.f32.mrf.mxu0
        %v673 = vadd.f32 0.0, %v672
        %v674 = vpop.f32.mrf.mxu0
        %675 = vdwg.mxu0
        %v676 = vadd.f32 %v593, %v668
        %v677 = vadd.f32 %v594, %v673
        %678 = vst.msk [vmem:[#allocation5] sm:$0xff] %vm282, %v676
        %679 = vst.msk [vmem:[#allocation5 + $0x8] sm:$0xff] %vm282, %v677
        %680 = vst.msk [vmem:[#allocation3] sm:$0xff] %vm578, %v542
        %681 = vst.msk [vmem:[#allocation3 + $0x8] sm:$0xff] %vm578, %v543
      $region44: #{tpu_custom_call.1} parent=31 // pred_fallthru
        _
      // Predicated region
      $region45: #{tpu_custom_call.1} parent=31 // pred_check
        %p682 = pneg %p257
      $region46: #{tpu_custom_call.1} parent=31 // pred_check_branch
        %684 = sbr.rel (%p682) target = $region48
      $region47: #{tpu_custom_call.1} parent=31 // pred_region
        %v685 = vld [vmem:[#allocation4] sm:$0xff]
        %v686 = vld [vmem:[#allocation4 + $0x8] sm:$0xff]
        %v687 = vrcp.pop %v685
        %v688 = vrcp.pop %v686
        %v689 = vld [vmem:[#allocation5] sm:$0xff]
        %v690 = vld [vmem:[#allocation5 + $0x8] sm:$0xff]
        %692 = vset.pattern.permute.xlu0 0
        %693 = vperm.xlu0 %692, %v687
        %v694 = vpop.permute.xlu0 %693
        %697 = vset.pattern.permute.xlu0 0
        %698 = vperm.xlu0 %697, %v688
        %v699 = vpop.permute.xlu0 %698
        %v701 = vmul.f32 %v689, %v694
        %v702 = vmul.f32 %v690, %v699
        %703 = vst.msk [vmem:[%s255] sm:$0xff] %vm282, %v701
        %704 = vst.msk [vmem:[%s255 + $0x8] sm:$0xff] %vm282, %v702
      $region48: #{tpu_custom_call.1} parent=31 // pred_fallthru
        _
      %s705 = smul.u32 2, %s20
      %p706 = scmp.lt.s32.totalorder %s19, 1
      %s707 = scalar_select %p706, %s19, 1
      %p708 = scmp.lt.s32.totalorder %s705, 1
      %s709 = scalar_select %p708, %s705, 1
      %s710 = smul.addr %s707, 2
      %s711 = sadd.s32 %s709, %s710
      %s712 = smul.addr %s711, 8
      %s713 = scalar_lea.vmem %s3, %s712
      // Predicated region
      $region49: #{tpu_custom_call.1} parent=31 // pred_check
        %p714 = pneg %p133
      $region50: #{tpu_custom_call.1} parent=31 // pred_check_branch
        %716 = sbr.rel (%p714) target = $region52
      $region51: #{tpu_custom_call.1} parent=31 // pred_region
        %s717 = smul.u32 2, %s20
      $region52: #{tpu_custom_call.1} parent=31 // pred_fallthru
        _
    $region32: #{tpu_custom_call.1} parent=5 // pred_fallthru
      _
    %p718 = scmp.le.s32.totalorder 2, %s9
    // Predicated region
    $region53: #{tpu_custom_call.1} parent=5 // pred_check
      %p719 = pneg %p718
    $region54: #{tpu_custom_call.1} parent=5 // pred_check_branch
      %721 = sbr.rel (%p719) target = $region56
    $region55: #{tpu_custom_call.1} parent=5 // pred_region
      %s722 = ssub.s32 %s9, 2
      // Predicated region
      $region57: #{tpu_custom_call.1} parent=55 // pred_check
        %p723 = pneg %p139
      $region58: #{tpu_custom_call.1} parent=55 // pred_check_branch
        %725 = sbr.rel (%p723) target = $region60
      $region59: #{tpu_custom_call.1} parent=55 // pred_region
        %s726 = smul.u32 2, %s23
        %p727 = scmp.lt.s32.totalorder %s22, 1
        %s728 = scalar_select %p727, %s22, 1
        %p729 = scmp.lt.s32.totalorder %s726, 1
        %s730 = scalar_select %p729, %s726, 1
        %s731 = smul.addr %s728, 2
        %s732 = sadd.s32 %s730, %s731
        %s733 = smul.addr %s732, 8
        %s734 = scalar_lea.vmem %s3, %s733
      $region60: #{tpu_custom_call.1} parent=55 // pred_fallthru
        _
    $region56: #{tpu_custom_call.1} parent=5 // pred_fallthru
      _
  $region6: #{tpu_custom_call.1} parent=0 // loop_footer
    %s13 = sadd.s32 1, %s9
  $region7: #{tpu_custom_call.1} parent=0 // loop_footer_branch
    %8 = sbr.rel target = $region3
  $region8: #{tpu_custom_call.1} parent=0 // loop_exit
    _

</llo_original>
